<compile_context>
chip_gen: v7x
topology: tpu7x:2x2x1
jax: 0.10.0
libtpu: 0.0.40
codegen_flags: <defaults>
</compile_context>

<pallas_src>
import functools

import jax
import jax.numpy as jnp
from jax import lax
from jax.experimental import pallas as pl
from jax.experimental.pallas import tpu as pltpu


def _round_up(x, m):
    return ((x + m - 1) // m) * m


def _vmem_budget(nbytes):
    # explicit scoped-VMEM budget; clamp to the v7x-safe 32 MiB ceiling
    return int(min(32 * 1024 * 1024, max(4 * 1024 * 1024, 2 * nbytes)))


# ---------------------------------------------------------------------------
# Kernel 1: projection MLP (Linear -> ReLU -> Linear) + L2 normalize
#   grid = (modality, batch_tile); weights resident across batch tiles
# ---------------------------------------------------------------------------
def _proj_norm_kernel(x_ref, w1_ref, b1_ref, w2_ref, b2_ref, o_ref):
    x = x_ref[0]                                   # [TB, W]  bf16
    w1 = w1_ref[0]                                 # [W,  H]  bf16 (resident)
    b1 = b1_ref[0]                                 # [1,  H]  f32
    w2 = w2_ref[0]                                 # [H,  E]  bf16 (resident)
    b2 = b2_ref[0]                                 # [1,  E]  f32

    # bf16 MXU operands, f32 accumulation
    h = jnp.dot(x, w1, preferred_element_type=jnp.float32) + b1
    h = jnp.maximum(h, 0.0)                        # ReLU (f32, VPU)
    y = jnp.dot(h.astype(jnp.bfloat16), w2,
                preferred_element_type=jnp.float32) + b2

    # F.normalize(dim=-1): y / max(||y||, 1e-12) == y * rsqrt(max(||y||^2, 1e-24))
    ss = jnp.sum(y * y, axis=-1, keepdims=True)
    o_ref[0] = y * lax.rsqrt(jnp.maximum(ss, 1e-24))


def dual_proj_normalize(a_x, t_x, a_params, t_params, *, batch_tile=128):
    """Project+normalize audio and text features with one gridded pallas_call.

    Returns a stacked, zero-padded array of shape [2, B_pad, E_pad] (f32):
    index 0 = audio embeddings, index 1 = text embeddings.  Padded feature
    columns are exactly zero; padded batch rows are masked later in the loss.
    """
    B = a_x.shape[0]
    aw1, ab1, aw2, ab2 = a_params
    tw1, tb1, tw2, tb2 = t_params
    H = aw1.shape[1]
    E = aw2.shape[1]
    W = max(a_x.shape[1], t_x.shape[1])

    # lane-dense padding: feature dims -> multiples of 128, batch -> bf16 sublanes
    W_pad = _round_up(W, 128)
    H_pad = _round_up(H, 128)
    E_pad = _round_up(E, 128)
    TB = min(batch_tile, _round_up(B, 16))
    B_pad = _round_up(B, TB)

    def pad2(x, r, c):
        return jnp.pad(x, ((0, r - x.shape[0]), (0, c - x.shape[1])))

    # zero-padded + stacked operands: zero-padded feature columns/rows are
    # exact no-ops for the linear layers, the L2 norm and the similarity matmul
    x_stack = jnp.stack([pad2(a_x, B_pad, W_pad),
                         pad2(t_x, B_pad, W_pad)]).astype(jnp.bfloat16)
    w1 = jnp.stack([pad2(aw1, W_pad, H_pad),
                    pad2(tw1, W_pad, H_pad)]).astype(jnp.bfloat16)
    b1 = jnp.stack([pad2(ab1.reshape(1, -1), 1, H_pad),
                    pad2(tb1.reshape(1, -1), 1, H_pad)]).astype(jnp.float32)
    w2 = jnp.stack([pad2(aw2, H_pad, E_pad),
                    pad2(tw2, H_pad, E_pad)]).astype(jnp.bfloat16)
    b2 = jnp.stack([pad2(ab2.reshape(1, -1), 1, E_pad),
                    pad2(tb2.reshape(1, -1), 1, E_pad)]).astype(jnp.float32)

    vmem_bytes = _vmem_budget(
        2 * (TB * W_pad * 2 + TB * E_pad * 4          # streamed x / out tiles
             + W_pad * H_pad * 2 + H_pad * E_pad * 2  # resident weights (bf16)
             + H_pad * 4 + E_pad * 4)                 # biases
        + 3 * TB * H_pad * 4)                         # h / y intermediates

    return pl.pallas_call(
        _proj_norm_kernel,
        out_shape=jax.ShapeDtypeStruct((2, B_pad, E_pad), jnp.float32),
        grid=(2, B_pad // TB),
        in_specs=[
            pl.BlockSpec((1, TB, W_pad), lambda m, i: (m, i, 0)),     # x tile
            pl.BlockSpec((1, W_pad, H_pad), lambda m, i: (m, 0, 0)),  # w1 resident
            pl.BlockSpec((1, 1, H_pad), lambda m, i: (m, 0, 0)),      # b1 resident
            pl.BlockSpec((1, H_pad, E_pad), lambda m, i: (m, 0, 0)),  # w2 resident
            pl.BlockSpec((1, 1, E_pad), lambda m, i: (m, 0, 0)),      # b2 resident
        ],
        out_specs=pl.BlockSpec((1, TB, E_pad), lambda m, i: (m, i, 0)),
        compiler_params=pltpu.CompilerParams(
            dimension_semantics=("parallel", "parallel"),
            vmem_limit_bytes=vmem_bytes),
    )(x_stack, w1, b1, w2, b2)


# ---------------------------------------------------------------------------
# Kernel 2: similarity + audio-text contrastive loss + embedding regularization
# ---------------------------------------------------------------------------
def _atc_loss_kernel(a_ref, t_ref, idxc_ref, idxr_ref, invt_ref, o_ref, *,
                     valid_b, true_elems, embed_reg):
    a = a_ref[0]                                    # [Bp, Ep] f32, L2-normalized
    t = t_ref[0]                                    # [Bp, Ep] f32, L2-normalized
    inv_temp = invt_ref[0, 0]                       # scalar 1/temp from SMEM
    Bp = a.shape[0]
    NEG = jnp.float32(-1e30)                        # finite: avoids inf*0 NaNs
    inv_b = jnp.float32(1.0 / valid_b)

    # validity masks for zero-padded batch rows/cols (padding never hits the loss)
    row_valid = lax.broadcasted_iota(jnp.int32, (Bp, 1), 0) < valid_b   # [Bp,1]
    col_valid = lax.broadcasted_iota(jnp.int32, (1, Bp), 1) < valid_b   # [1,Bp]
    row_mask = row_valid.astype(jnp.float32)
    col_mask = col_valid.astype(jnp.float32)

    # sim = A @ T^T (bf16 MXU operands, f32 accumulation), pre-scaled by 1/temp
    sim = lax.dot_general(
        a.astype(jnp.bfloat16), t.astype(jnp.bfloat16),
        (((1,), (1,)), ((), ())),
        preferred_element_type=jnp.float32) * inv_temp                  # [Bp,Bp]

    # positive-pair mask from int32 ids (exact integer compare, built in-kernel)
    pos = (idxc_ref[...] == idxr_ref[...]).astype(jnp.float32)          # [Bp,Bp]
    pos_valid = pos * row_mask * col_mask
    # padded ids are -1, so valid rows/cols never match padding: the row/col
    # sums over `pos` equal the sums the reference computes over the true batch
    tgt_a2t = pos_valid / jnp.sum(pos, axis=1, keepdims=True)
    tgt_t2a = pos_valid / jnp.sum(pos, axis=0, keepdims=True)

    def _sum_all(x):                                # -> (1, 1)
        return jnp.sum(jnp.sum(x, axis=1, keepdims=True), axis=0, keepdims=True)

    # a2t: row-wise log-softmax (padded text columns masked out)
    la = jnp.where(col_valid, sim, NEG)
    za = la - jnp.max(la, axis=1, keepdims=True)
    logsm_a2t = za - jnp.log(jnp.sum(jnp.exp(za), axis=1, keepdims=True))
    loss_a2t = -_sum_all(logsm_a2t * tgt_a2t) * inv_b

    # t2a: column-wise log-softmax of the SAME matrix (== row softmax of sim^T),
    # so no BxB transpose / second matmul is materialized
    lt = jnp.where(row_valid, sim, NEG)
    zt = lt - jnp.max(lt, axis=0, keepdims=True)
    logsm_t2a = zt - jnp.log(jnp.sum(jnp.exp(zt), axis=0, keepdims=True))
    loss_t2a = -_sum_all(logsm_t2a * tgt_t2a) * inv_b

    loss = 0.5 * (loss_a2t + loss_t2a)                                  # (1,1)

    if embed_reg:
        # mean(|x|) / sqrt(sum(x^2)) over the TRUE (unpadded) elements
        a_m = a * row_mask
        t_m = t * row_mask
        inv_n = jnp.float32(1.0 / true_elems)
        reg_a = _sum_all(jnp.abs(a_m)) * inv_n * lax.rsqrt(
            jnp.maximum(_sum_all(a_m * a_m), 1e-30))
        reg_t = _sum_all(jnp.abs(t_m)) * inv_n * lax.rsqrt(
            jnp.maximum(_sum_all(t_m * t_m), 1e-30))
        loss = loss + reg_a + reg_t

    o_ref[...] = loss


def atc_loss(emb_stack, idx, temp, *, valid_b, embed_size, embed_reg=True):
    _, B_pad, E_pad = emb_stack.shape
    idx = idx.astype(jnp.int32)
    idx_pad = jnp.pad(idx, (0, B_pad - valid_b), constant_values=-1)
    idx_col = idx_pad.reshape(B_pad, 1)
    idx_row = idx_pad.reshape(1, B_pad)
    inv_temp = (1.0 / temp).astype(jnp.float32).reshape(1, 1)

    kernel = functools.partial(
        _atc_loss_kernel,
        valid_b=valid_b,
        true_elems=valid_b * embed_size,
        embed_reg=embed_reg)

    vmem_bytes = _vmem_budget(8 * B_pad * B_pad * 4 + 4 * B_pad * E_pad * 4)

    return pl.pallas_call(
        kernel,
        out_shape=jax.ShapeDtypeStruct((1, 1), jnp.float32),
        grid=(1,),
        in_specs=[
            # both embeddings come from the same stacked array: modality blocks
            # are selected via the index_map, no host-side slice copies
            pl.BlockSpec((1, B_pad, E_pad), lambda i: (0, 0, 0)),   # audio
            pl.BlockSpec((1, B_pad, E_pad), lambda i: (1, 0, 0)),   # text
            pl.BlockSpec((B_pad, 1), lambda i: (0, 0)),             # idx column (i32)
            pl.BlockSpec((1, B_pad), lambda i: (0, 0)),             # idx row (i32)
            pl.BlockSpec(memory_space=pltpu.MemorySpace.SMEM),      # 1/temp scalar
        ],
        out_specs=pl.BlockSpec((1, 1), lambda i: (0, 0)),
        compiler_params=pltpu.CompilerParams(
            dimension_semantics=("arbitrary",),
            vmem_limit_bytes=vmem_bytes),
    )(emb_stack, emb_stack, idx_col, idx_row, inv_temp)


# ---------------------------------------------------------------------------
# Stand-in encoders (plain JAX glue) + parameter init
# ---------------------------------------------------------------------------
def audio_encoder(audio, w):
    # audio: [B, T_a, F_mel] -> mean-pool over time -> linear -> [B, audio_width]
    return jnp.mean(audio, axis=1) @ w


def text_encoder(tokens, emb_table):
    # tokens: [B, T_t] int32 -> [B, T_t, text_width]
    return emb_table[tokens]


def init_params(key, *, n_mels, audio_width, text_width, vocab, embed_size, temp):
    ks = jax.random.split(key, 8)

    def lin(k, fan_in, fan_out):
        bound = 1.0 / jnp.sqrt(fan_in)
        kw, kb = jax.random.split(k)
        w = jax.random.uniform(kw, (fan_in, fan_out), jnp.float32, -bound, bound)
        b = jax.random.uniform(kb, (fan_out,), jnp.float32, -bound, bound)
        return w, b

    aw1, ab1 = lin(ks[0], audio_width, embed_size)
    aw2, ab2 = lin(ks[1], embed_size, embed_size)
    tw1, tb1 = lin(ks[2], text_width, embed_size)
    tw2, tb2 = lin(ks[3], embed_size, embed_size)
    return {
        "audio_enc_w": jax.random.normal(ks[4], (n_mels, audio_width), jnp.float32) * 0.02,
        "text_emb": jax.random.normal(ks[5], (vocab, text_width), jnp.float32) * 0.02,
        "audio_proj": (aw1, ab1, aw2, ab2),
        "text_proj": (tw1, tb1, tw2, tb2),
        "temp": jnp.float32(temp),
    }


def ase_forward(params, audio, text_tokens, idx, embed_reg=True):
    audio_feats = audio_encoder(audio, params["audio_enc_w"])       # [B, audio_width]
    text_feats = text_encoder(text_tokens, params["text_emb"])      # [B, T, text_width]
    text_cls = text_feats[:, 0, :]                                  # [B, text_width]

    emb_stack = dual_proj_normalize(audio_feats, text_cls,
                                    params["audio_proj"], params["text_proj"])
    loss = atc_loss(emb_stack, idx, params["temp"],
                    valid_b=audio_feats.shape[0],
                    embed_size=params["audio_proj"][2].shape[1],
                    embed_reg=embed_reg)
    return loss[0, 0]


# pure-JAX reference for a loose numerical sanity check (bf16 MXU operands in
# the kernels introduce small, bounded drift)
def ase_forward_reference(params, audio, text_tokens, idx, embed_reg=True):
    af = audio_encoder(audio, params["audio_enc_w"])
    tf_ = text_encoder(text_tokens, params["text_emb"])[:, 0, :]

    def proj(x, p):
        w1, b1, w2, b2 = p
        y = jnp.maximum(x @ w1 + b1, 0.0) @ w2 + b2
        n = jnp.sqrt(jnp.sum(y * y, axis=-1, keepdims=True))
        return y / jnp.maximum(n, 1e-12)

    a = proj(af, params["audio_proj"])
    t = proj(tf_, params["text_proj"])
    temp = params["temp"]
    sim_a2t = a @ t.T / temp
    sim_t2a = t @ a.T / temp
    pos = (idx.reshape(-1, 1) == idx.reshape(1, -1)).astype(jnp.float32)
    tgt = pos / jnp.sum(pos, axis=1, keepdims=True)

    def ce(logits):
        return -jnp.mean(jnp.sum(jax.nn.log_softmax(logits, axis=1) * tgt, axis=1))

    loss = 0.5 * (ce(sim_a2t) + ce(sim_t2a))
    if embed_reg:
        loss = loss + jnp.mean(jnp.abs(a)) / jnp.sqrt(jnp.sum(a * a)) \
                    + jnp.mean(jnp.abs(t)) / jnp.sqrt(jnp.sum(t * t))
    return loss


if __name__ == "__main__":
    # small config
    B, T_a, N_MELS = 8, 16, 64
    T_T, VOCAB = 8, 100
    AUDIO_WIDTH, TEXT_WIDTH, EMBED = 64, 48, 32
    TEMP = 0.07

    key = jax.random.PRNGKey(0)
    k_p, k_a, k_t = jax.random.split(key, 3)

    params = init_params(k_p, n_mels=N_MELS, audio_width=AUDIO_WIDTH,
                         text_width=TEXT_WIDTH, vocab=VOCAB,
                         embed_size=EMBED, temp=TEMP)

    audio = jax.random.normal(k_a, (B, T_a, N_MELS), jnp.float32)
    text_tokens = jax.random.randint(k_t, (B, T_T), 0, VOCAB, jnp.int32)
    idx = jnp.array([0, 1, 2, 0, 3, 1, 4, 5], dtype=jnp.int32)  # some repeats

    fwd = jax.jit(functools.partial(ase_forward, embed_reg=True))
    loss = jax.block_until_ready(fwd(params, audio, text_tokens, idx))
    assert jnp.isfinite(loss), f"non-finite loss: {loss}"

    ref = jax.block_until_ready(
        ase_forward_reference(params, audio, text_tokens, idx, embed_reg=True))
    assert abs(float(loss) - float(ref)) < 0.15 * abs(float(ref)) + 0.15, \
        f"kernel loss {float(loss)} vs reference {float(ref)}"

    print("KERNEL_OK")
</pallas_src>

<mosaic_0001>
module attributes {stable_mosaic.version = 11 : i64} {
  func.func @_proj_norm_kernel(%arg0: i32, %arg1: i32, %arg2: memref<1x16x128xbf16, #tpu.memory_space<vmem>>, %arg3: memref<1x128x128xbf16, #tpu.memory_space<vmem>>, %arg4: memref<1x1x128xf32, #tpu.memory_space<vmem>>, %arg5: memref<1x128x128xbf16, #tpu.memory_space<vmem>>, %arg6: memref<1x1x128xf32, #tpu.memory_space<vmem>>, %arg7: memref<1x16x128xf32, #tpu.memory_space<vmem>>) attributes {dimension_semantics = [#tpu.dimension_semantics<parallel>, #tpu.dimension_semantics<parallel>], iteration_bounds = array<i64: 2, 1>, scalar_prefetch = 0 : i64, scratch_operands = 0 : i64, tpu.core_type = #tpu.core_type<tc>, window_params = [{transform_indices = @transform_0, window_bounds = array<i64: 1, 16, 128>}, {transform_indices = @transform_1, window_bounds = array<i64: 1, 128, 128>}, {transform_indices = @transform_2, window_bounds = array<i64: 1, 1, 128>}, {transform_indices = @transform_3, window_bounds = array<i64: 1, 128, 128>}, {transform_indices = @transform_4, window_bounds = array<i64: 1, 1, 128>}, {transform_indices = @transform_5, window_bounds = array<i64: 1, 16, 128>}]} {
    %c0 = arith.constant 0 : index
    %c0_0 = arith.constant 0 : index
    %c0_1 = arith.constant 0 : index
    %0 = vector.load %arg2[%c0, %c0_0, %c0_1] : memref<1x16x128xbf16, #tpu.memory_space<vmem>>, vector<1x16x128xbf16>
    %1 = vector.shape_cast %0 : vector<1x16x128xbf16> to vector<16x128xbf16>
    %c0_2 = arith.constant 0 : index
    %c0_3 = arith.constant 0 : index
    %c0_4 = arith.constant 0 : index
    %2 = vector.load %arg3[%c0_2, %c0_3, %c0_4] : memref<1x128x128xbf16, #tpu.memory_space<vmem>>, vector<1x128x128xbf16>
    %3 = vector.shape_cast %2 : vector<1x128x128xbf16> to vector<128x128xbf16>
    %c0_5 = arith.constant 0 : index
    %c0_6 = arith.constant 0 : index
    %c0_7 = arith.constant 0 : index
    %4 = vector.load %arg4[%c0_5, %c0_6, %c0_7] : memref<1x1x128xf32, #tpu.memory_space<vmem>>, vector<1x1x128xf32>
    %5 = vector.shape_cast %4 : vector<1x1x128xf32> to vector<1x128xf32>
    %c0_8 = arith.constant 0 : index
    %c0_9 = arith.constant 0 : index
    %c0_10 = arith.constant 0 : index
    %6 = vector.load %arg5[%c0_8, %c0_9, %c0_10] : memref<1x128x128xbf16, #tpu.memory_space<vmem>>, vector<1x128x128xbf16>
    %7 = vector.shape_cast %6 : vector<1x128x128xbf16> to vector<128x128xbf16>
    %c0_11 = arith.constant 0 : index
    %c0_12 = arith.constant 0 : index
    %c0_13 = arith.constant 0 : index
    %8 = vector.load %arg6[%c0_11, %c0_12, %c0_13] : memref<1x1x128xf32, #tpu.memory_space<vmem>>, vector<1x1x128xf32>
    %9 = vector.shape_cast %8 : vector<1x1x128xf32> to vector<1x128xf32>
    %cst = arith.constant dense<0.000000e+00> : vector<16x128xf32>
    %10 = tpu.matmul %1, %3, %cst {dimension_numbers = #tpu.dot_dimension_numbers<[1], [0], [0], [1], [0, 0, 1, 1], [], []>} : vector<16x128xbf16>, vector<128x128xbf16>, vector<16x128xf32> -> vector<16x128xf32>
    %11 = vector.broadcast %5 : vector<1x128xf32> to vector<16x128xf32>
    %12 = arith.addf %10, %11 : vector<16x128xf32>
    %cst_14 = arith.constant 0.000000e+00 : f32
    %13 = vector.broadcast %cst_14 : f32 to vector<16x128xf32>
    %14 = arith.maximumf %12, %13 : vector<16x128xf32>
    %15 = arith.truncf %14 : vector<16x128xf32> to vector<16x128xbf16>
    %cst_15 = arith.constant dense<0.000000e+00> : vector<16x128xf32>
    %16 = tpu.matmul %15, %7, %cst_15 {dimension_numbers = #tpu.dot_dimension_numbers<[1], [0], [0], [1], [0, 0, 1, 1], [], []>} : vector<16x128xbf16>, vector<128x128xbf16>, vector<16x128xf32> -> vector<16x128xf32>
    %17 = vector.broadcast %9 : vector<1x128xf32> to vector<16x128xf32>
    %18 = arith.addf %16, %17 : vector<16x128xf32>
    %19 = arith.mulf %18, %18 : vector<16x128xf32>
    %cst_16 = arith.constant dense<0.000000e+00> : vector<16xf32>
    %20 = vector.multi_reduction <add>, %19, %cst_16 [1] : vector<16x128xf32> to vector<16xf32>
    %21 = vector.shape_cast %20 : vector<16xf32> to vector<16x1xf32>
    %cst_17 = arith.constant 1.000000e-24 : f32
    %22 = vector.broadcast %cst_17 : f32 to vector<16x1xf32>
    %23 = arith.maximumf %21, %22 : vector<16x1xf32>
    %24 = math.rsqrt %23 : vector<16x1xf32>
    %25 = vector.broadcast %24 : vector<16x1xf32> to vector<16x128xf32>
    %26 = arith.mulf %18, %25 : vector<16x128xf32>
    %c0_18 = arith.constant 0 : index
    %c0_19 = arith.constant 0 : index
    %c0_20 = arith.constant 0 : index
    %27 = vector.load %arg7[%c0_18, %c0_19, %c0_20] : memref<1x16x128xf32, #tpu.memory_space<vmem>>, vector<1x16x128xf32>
    %28 = vector.shape_cast %27 : vector<1x16x128xf32> to vector<16x128xf32>
    %29 = vector.shape_cast %26 : vector<16x128xf32> to vector<1x16x128xf32>
    tpu.vector_store %arg7[%c0_18, %c0_19, %c0_20], %29 {strides = array<i32>} : memref<1x16x128xf32, #tpu.memory_space<vmem>>, vector<1x16x128xf32>,
    return
  }
  func.func @transform_0(%arg0: i32, %arg1: i32) -> (i32, i32, i32) {
    %c0_i32 = arith.constant 0 : i32
    %c0_i32_0 = arith.constant 0 : i32
    return %arg0, %arg1, %c0_i32 : i32, i32, i32
  }
  func.func @transform_1(%arg0: i32, %arg1: i32) -> (i32, i32, i32) {
    %c0_i32 = arith.constant 0 : i32
    %c0_i32_0 = arith.constant 0 : i32
    %c0_i32_1 = arith.constant 0 : i32
    return %arg0, %c0_i32, %c0_i32_0 : i32, i32, i32
  }
  func.func @transform_2(%arg0: i32, %arg1: i32) -> (i32, i32, i32) {
    %c0_i32 = arith.constant 0 : i32
    %c0_i32_0 = arith.constant 0 : i32
    %c0_i32_1 = arith.constant 0 : i32
    return %arg0, %c0_i32, %c0_i32_0 : i32, i32, i32
  }
  func.func @transform_3(%arg0: i32, %arg1: i32) -> (i32, i32, i32) {
    %c0_i32 = arith.constant 0 : i32
    %c0_i32_0 = arith.constant 0 : i32
    %c0_i32_1 = arith.constant 0 : i32
    return %arg0, %c0_i32, %c0_i32_0 : i32, i32, i32
  }
  func.func @transform_4(%arg0: i32, %arg1: i32) -> (i32, i32, i32) {
    %c0_i32 = arith.constant 0 : i32
    %c0_i32_0 = arith.constant 0 : i32
    %c0_i32_1 = arith.constant 0 : i32
    return %arg0, %c0_i32, %c0_i32_0 : i32, i32, i32
  }
  func.func @transform_5(%arg0: i32, %arg1: i32) -> (i32, i32, i32) {
    %c0_i32 = arith.constant 0 : i32
    %c0_i32_0 = arith.constant 0 : i32
    return %arg0, %arg1, %c0_i32 : i32, i32, i32
  }
}

module attributes {stable_mosaic.version = 11 : i64} {
  func.func @_atc_loss_kernel(%arg0: i32, %arg1: memref<1x16x128xf32, #tpu.memory_space<vmem>>, %arg2: memref<1x16x128xf32, #tpu.memory_space<vmem>>, %arg3: memref<16x1xi32, #tpu.memory_space<vmem>>, %arg4: memref<1x16xi32, #tpu.memory_space<vmem>>, %arg5: memref<1x1xf32, #tpu.memory_space<smem>>, %arg6: memref<1x1xf32, #tpu.memory_space<vmem>>) attributes {dimension_semantics = [#tpu.dimension_semantics<arbitrary>], iteration_bounds = array<i64: 1>, scalar_prefetch = 0 : i64, scratch_operands = 0 : i64, tpu.core_type = #tpu.core_type<tc>, window_params = [{transform_indices = @transform_0, window_bounds = array<i64: 1, 16, 128>}, {transform_indices = @transform_1, window_bounds = array<i64: 1, 16, 128>}, {pipeline_mode = #tpu.pipeline_mode<synchronous>, transform_indices = @transform_2, window_bounds = array<i64: 16, 1>}, {pipeline_mode = #tpu.pipeline_mode<synchronous>, transform_indices = @transform_3, window_bounds = array<i64: 1, 16>}, {transform_indices = @transform_4, window_bounds = array<i64: 1, 1>}, {pipeline_mode = #tpu.pipeline_mode<synchronous>, transform_indices = @transform_5, window_bounds = array<i64: 1, 1>}]} {
    %c0 = arith.constant 0 : index
    %c0_0 = arith.constant 0 : index
    %c0_1 = arith.constant 0 : index
    %0 = vector.load %arg1[%c0, %c0_0, %c0_1] : memref<1x16x128xf32, #tpu.memory_space<vmem>>, vector<1x16x128xf32>
    %1 = vector.shape_cast %0 : vector<1x16x128xf32> to vector<16x128xf32>
    %c0_2 = arith.constant 0 : index
    %c0_3 = arith.constant 0 : index
    %c0_4 = arith.constant 0 : index
    %2 = vector.load %arg2[%c0_2, %c0_3, %c0_4] : memref<1x16x128xf32, #tpu.memory_space<vmem>>, vector<1x16x128xf32>
    %3 = vector.shape_cast %2 : vector<1x16x128xf32> to vector<16x128xf32>
    %c0_5 = arith.constant 0 : index
    %c0_6 = arith.constant 0 : index
    %4 = memref.load %arg5[%c0_5, %c0_6] : memref<1x1xf32, #tpu.memory_space<smem>>
    %5 = tpu.iota {dimensions = array<i32: 0>} : vector<16x1xi32>
    %c8_i32 = arith.constant 8 : i32
    %6 = vector.broadcast %c8_i32 : i32 to vector<16x1xi32>
    %7 = arith.cmpi slt, %5, %6 : vector<16x1xi32>
    %8 = tpu.iota {dimensions = array<i32: 1>} : vector<1x16xi32>
    %c8_i32_7 = arith.constant 8 : i32
    %9 = vector.broadcast %c8_i32_7 : i32 to vector<1x16xi32>
    %10 = arith.cmpi slt, %8, %9 : vector<1x16xi32>
    %11 = arith.extui %7 : vector<16x1xi1> to vector<16x1xi32>
    %12 = arith.sitofp %11 : vector<16x1xi32> to vector<16x1xf32>
    %13 = arith.extui %10 : vector<1x16xi1> to vector<1x16xi32>
    %14 = arith.sitofp %13 : vector<1x16xi32> to vector<1x16xf32>
    %15 = arith.truncf %1 : vector<16x128xf32> to vector<16x128xbf16>
    %16 = arith.truncf %3 : vector<16x128xf32> to vector<16x128xbf16>
    %cst = arith.constant dense<0.000000e+00> : vector<16x16xf32>
    %17 = tpu.matmul %15, %16, %cst {dimension_numbers = #tpu.dot_dimension_numbers<[1], [1], [0], [0], [0, 0, 1, 0], [], []>} : vector<16x128xbf16>, vector<16x128xbf16>, vector<16x16xf32> -> vector<16x16xf32>
    %18 = vector.broadcast %4 : f32 to vector<16x16xf32>
    %19 = arith.mulf %17, %18 : vector<16x16xf32>
    %c0_8 = arith.constant 0 : index
    %c0_9 = arith.constant 0 : index
    %20 = vector.load %arg3[%c0_8, %c0_9] : memref<16x1xi32, #tpu.memory_space<vmem>>, vector<16x1xi32>
    %c0_10 = arith.constant 0 : index
    %c0_11 = arith.constant 0 : index
    %21 = vector.load %arg4[%c0_10, %c0_11] : memref<1x16xi32, #tpu.memory_space<vmem>>, vector<1x16xi32>
    %22 = vector.broadcast %20 : vector<16x1xi32> to vector<16x16xi32>
    %23 = vector.broadcast %21 : vector<1x16xi32> to vector<16x16xi32>
    %24 = arith.cmpi eq, %22, %23 : vector<16x16xi32>
    %25 = arith.extui %24 : vector<16x16xi1> to vector<16x16xi32>
    %26 = arith.sitofp %25 : vector<16x16xi32> to vector<16x16xf32>
    %27 = vector.broadcast %12 : vector<16x1xf32> to vector<16x16xf32>
    %28 = arith.mulf %26, %27 : vector<16x16xf32>
    %29 = vector.broadcast %14 : vector<1x16xf32> to vector<16x16xf32>
    %30 = arith.mulf %28, %29 : vector<16x16xf32>
    %cst_12 = arith.constant dense<0.000000e+00> : vector<16xf32>
    %31 = vector.multi_reduction <add>, %26, %cst_12 [1] : vector<16x16xf32> to vector<16xf32>
    %32 = vector.shape_cast %31 : vector<16xf32> to vector<16x1xf32>
    %33 = vector.broadcast %32 : vector<16x1xf32> to vector<16x16xf32>
    %34 = arith.divf %30, %33 : vector<16x16xf32>
    %cst_13 = arith.constant dense<0.000000e+00> : vector<16xf32>
    %35 = vector.multi_reduction <add>, %26, %cst_13 [0] : vector<16x16xf32> to vector<16xf32>
    %36 = vector.shape_cast %35 : vector<16xf32> to vector<1x16xf32>
    %37 = vector.broadcast %36 : vector<1x16xf32> to vector<16x16xf32>
    %38 = arith.divf %30, %37 : vector<16x16xf32>
    %cst_14 = arith.constant -1.000000e+30 : f32
    %39 = vector.shape_cast %10 : vector<1x16xi1> to vector<1x16xi1>
    %40 = vector.broadcast %39 : vector<1x16xi1> to vector<16x16xi1>
    %41 = vector.broadcast %cst_14 : f32 to vector<16x16xf32>
    %42 = arith.select %40, %19, %41 : vector<16x16xi1>, vector<16x16xf32>
    %cst_15 = arith.constant dense<0xFF800000> : vector<16xf32>
    %43 = vector.multi_reduction <maximumf>, %42, %cst_15 [1] : vector<16x16xf32> to vector<16xf32>
    %44 = vector.shape_cast %43 : vector<16xf32> to vector<16x1xf32>
    %45 = vector.broadcast %44 : vector<16x1xf32> to vector<16x16xf32>
    %46 = arith.subf %42, %45 : vector<16x16xf32>
    %47 = math.exp %46 : vector<16x16xf32>
    %cst_16 = arith.constant dense<0.000000e+00> : vector<16xf32>
    %48 = vector.multi_reduction <add>, %47, %cst_16 [1] : vector<16x16xf32> to vector<16xf32>
    %49 = vector.shape_cast %48 : vector<16xf32> to vector<16x1xf32>
    %50 = math.log %49 : vector<16x1xf32>
    %51 = vector.broadcast %50 : vector<16x1xf32> to vector<16x16xf32>
    %52 = arith.subf %46, %51 : vector<16x16xf32>
    %53 = arith.mulf %52, %34 : vector<16x16xf32>
    %cst_17 = arith.constant dense<0.000000e+00> : vector<16xf32>
    %54 = vector.multi_reduction <add>, %53, %cst_17 [1] : vector<16x16xf32> to vector<16xf32>
    %55 = vector.shape_cast %54 : vector<16xf32> to vector<16x1xf32>
    %cst_18 = arith.constant dense<0.000000e+00> : vector<1xf32>
    %56 = vector.multi_reduction <add>, %55, %cst_18 [0] : vector<16x1xf32> to vector<1xf32>
    %57 = vector.shape_cast %56 : vector<1xf32> to vector<1x1xf32>
    %cst_19 = arith.constant 0.000000e+00 : f32
    %58 = vector.broadcast %cst_19 : f32 to vector<1x1xf32>
    %59 = arith.subf %58, %57 : vector<1x1xf32>
    %cst_20 = arith.constant 1.250000e-01 : f32
    %60 = vector.broadcast %cst_20 : f32 to vector<1x1xf32>
    %61 = arith.mulf %59, %60 : vector<1x1xf32>
    %cst_21 = arith.constant -1.000000e+30 : f32
    %62 = vector.shape_cast %7 : vector<16x1xi1> to vector<16x1xi1>
    %63 = vector.broadcast %62 : vector<16x1xi1> to vector<16x16xi1>
    %64 = vector.broadcast %cst_21 : f32 to vector<16x16xf32>
    %65 = arith.select %63, %19, %64 : vector<16x16xi1>, vector<16x16xf32>
    %cst_22 = arith.constant dense<0xFF800000> : vector<16xf32>
    %66 = vector.multi_reduction <maximumf>, %65, %cst_22 [0] : vector<16x16xf32> to vector<16xf32>
    %67 = vector.shape_cast %66 : vector<16xf32> to vector<1x16xf32>
    %68 = vector.broadcast %67 : vector<1x16xf32> to vector<16x16xf32>
    %69 = arith.subf %65, %68 : vector<16x16xf32>
    %70 = math.exp %69 : vector<16x16xf32>
    %cst_23 = arith.constant dense<0.000000e+00> : vector<16xf32>
    %71 = vector.multi_reduction <add>, %70, %cst_23 [0] : vector<16x16xf32> to vector<16xf32>
    %72 = vector.shape_cast %71 : vector<16xf32> to vector<1x16xf32>
    %73 = math.log %72 : vector<1x16xf32>
    %74 = vector.broadcast %73 : vector<1x16xf32> to vector<16x16xf32>
    %75 = arith.subf %69, %74 : vector<16x16xf32>
    %76 = arith.mulf %75, %38 : vector<16x16xf32>
    %cst_24 = arith.constant dense<0.000000e+00> : vector<16xf32>
    %77 = vector.multi_reduction <add>, %76, %cst_24 [1] : vector<16x16xf32> to vector<16xf32>
    %78 = vector.shape_cast %77 : vector<16xf32> to vector<16x1xf32>
    %cst_25 = arith.constant dense<0.000000e+00> : vector<1xf32>
    %79 = vector.multi_reduction <add>, %78, %cst_25 [0] : vector<16x1xf32> to vector<1xf32>
    %80 = vector.shape_cast %79 : vector<1xf32> to vector<1x1xf32>
    %cst_26 = arith.constant 0.000000e+00 : f32
    %81 = vector.broadcast %cst_26 : f32 to vector<1x1xf32>
    %82 = arith.subf %81, %80 : vector<1x1xf32>
    %cst_27 = arith.constant 1.250000e-01 : f32
    %83 = vector.broadcast %cst_27 : f32 to vector<1x1xf32>
    %84 = arith.mulf %82, %83 : vector<1x1xf32>
    %85 = arith.addf %61, %84 : vector<1x1xf32>
    %cst_28 = arith.constant 5.000000e-01 : f32
    %86 = vector.broadcast %cst_28 : f32 to vector<1x1xf32>
    %87 = arith.mulf %86, %85 : vector<1x1xf32>
    %88 = vector.broadcast %12 : vector<16x1xf32> to vector<16x128xf32>
    %89 = arith.mulf %1, %88 : vector<16x128xf32>
    %90 = vector.broadcast %12 : vector<16x1xf32> to vector<16x128xf32>
    %91 = arith.mulf %3, %90 : vector<16x128xf32>
    %92 = math.absf %89 : vector<16x128xf32>
    %cst_29 = arith.constant dense<0.000000e+00> : vector<16xf32>
    %93 = vector.multi_reduction <add>, %92, %cst_29 [1] : vector<16x128xf32> to vector<16xf32>
    %94 = vector.shape_cast %93 : vector<16xf32> to vector<16x1xf32>
    %cst_30 = arith.constant dense<0.000000e+00> : vector<1xf32>
    %95 = vector.multi_reduction <add>, %94, %cst_30 [0] : vector<16x1xf32> to vector<1xf32>
    %96 = vector.shape_cast %95 : vector<1xf32> to vector<1x1xf32>
    %cst_31 = arith.constant 3.906250e-03 : f32
    %97 = vector.broadcast %cst_31 : f32 to vector<1x1xf32>
    %98 = arith.mulf %96, %97 : vector<1x1xf32>
    %99 = arith.mulf %89, %89 : vector<16x128xf32>
    %cst_32 = arith.constant dense<0.000000e+00> : vector<16xf32>
    %100 = vector.multi_reduction <add>, %99, %cst_32 [1] : vector<16x128xf32> to vector<16xf32>
    %101 = vector.shape_cast %100 : vector<16xf32> to vector<16x1xf32>
    %cst_33 = arith.constant dense<0.000000e+00> : vector<1xf32>
    %102 = vector.multi_reduction <add>, %101, %cst_33 [0] : vector<16x1xf32> to vector<1xf32>
    %103 = vector.shape_cast %102 : vector<1xf32> to vector<1x1xf32>
    %cst_34 = arith.constant 1.000000e-30 : f32
    %104 = vector.broadcast %cst_34 : f32 to vector<1x1xf32>
    %105 = arith.maximumf %103, %104 : vector<1x1xf32>
    %106 = math.rsqrt %105 : vector<1x1xf32>
    %107 = arith.mulf %98, %106 : vector<1x1xf32>
    %108 = math.absf %91 : vector<16x128xf32>
    %cst_35 = arith.constant dense<0.000000e+00> : vector<16xf32>
    %109 = vector.multi_reduction <add>, %108, %cst_35 [1] : vector<16x128xf32> to vector<16xf32>
    %110 = vector.shape_cast %109 : vector<16xf32> to vector<16x1xf32>
    %cst_36 = arith.constant dense<0.000000e+00> : vector<1xf32>
    %111 = vector.multi_reduction <add>, %110, %cst_36 [0] : vector<16x1xf32> to vector<1xf32>
    %112 = vector.shape_cast %111 : vector<1xf32> to vector<1x1xf32>
    %cst_37 = arith.constant 3.906250e-03 : f32
    %113 = vector.broadcast %cst_37 : f32 to vector<1x1xf32>
    %114 = arith.mulf %112, %113 : vector<1x1xf32>
    %115 = arith.mulf %91, %91 : vector<16x128xf32>
    %cst_38 = arith.constant dense<0.000000e+00> : vector<16xf32>
    %116 = vector.multi_reduction <add>, %115, %cst_38 [1] : vector<16x128xf32> to vector<16xf32>
    %117 = vector.shape_cast %116 : vector<16xf32> to vector<16x1xf32>
    %cst_39 = arith.constant dense<0.000000e+00> : vector<1xf32>
    %118 = vector.multi_reduction <add>, %117, %cst_39 [0] : vector<16x1xf32> to vector<1xf32>
    %119 = vector.shape_cast %118 : vector<1xf32> to vector<1x1xf32>
    %cst_40 = arith.constant 1.000000e-30 : f32
    %120 = vector.broadcast %cst_40 : f32 to vector<1x1xf32>
    %121 = arith.maximumf %119, %120 : vector<1x1xf32>
    %122 = math.rsqrt %121 : vector<1x1xf32>
    %123 = arith.mulf %114, %122 : vector<1x1xf32>
    %124 = arith.addf %87, %107 : vector<1x1xf32>
    %125 = arith.addf %124, %123 : vector<1x1xf32>
    %c0_41 = arith.constant 0 : index
    %c0_42 = arith.constant 0 : index
    %126 = vector.load %arg6[%c0_41, %c0_42] : memref<1x1xf32, #tpu.memory_space<vmem>>, vector<1x1xf32>
    tpu.vector_store %arg6[%c0_41, %c0_42], %125 {strides = array<i32>} : memref<1x1xf32, #tpu.memory_space<vmem>>, vector<1x1xf32>,
    return
  }
  func.func @transform_0(%arg0: i32) -> (i32, i32, i32) {
    %c0_i32 = arith.constant 0 : i32
    %c0_i32_0 = arith.constant 0 : i32
    %c0_i32_1 = arith.constant 0 : i32
    %c0_i32_2 = arith.constant 0 : i32
    return %c0_i32, %c0_i32_0, %c0_i32_1 : i32, i32, i32
  }
  func.func @transform_1(%arg0: i32) -> (i32, i32, i32) {
    %c1_i32 = arith.constant 1 : i32
    %c0_i32 = arith.constant 0 : i32
    %c0_i32_0 = arith.constant 0 : i32
    %c0_i32_1 = arith.constant 0 : i32
    return %c1_i32, %c0_i32, %c0_i32_0 : i32, i32, i32
  }
  func.func @transform_2(%arg0: i32) -> (i32, i32) {
    %c0_i32 = arith.constant 0 : i32
    %c0_i32_0 = arith.constant 0 : i32
    %c0_i32_1 = arith.constant 0 : i32
    return %c0_i32, %c0_i32_0 : i32, i32
  }
  func.func @transform_3(%arg0: i32) -> (i32, i32) {
    %c0_i32 = arith.constant 0 : i32
    %c0_i32_0 = arith.constant 0 : i32
    %c0_i32_1 = arith.constant 0 : i32
    return %c0_i32, %c0_i32_0 : i32, i32
  }
  func.func @transform_4(%arg0: i32) -> (i32, i32) {
    %c0_i32 = arith.constant 0 : i32
    %c0_i32_0 = arith.constant 0 : i32
    %c0_i32_1 = arith.constant 0 : i32
    return %c0_i32, %c0_i32_0 : i32, i32
  }
  func.func @transform_5(%arg0: i32) -> (i32, i32) {
    %c0_i32 = arith.constant 0 : i32
    %c0_i32_0 = arith.constant 0 : i32
    %c0_i32_1 = arith.constant 0 : i32
    return %c0_i32, %c0_i32_0 : i32, i32
  }
}

</mosaic_0001>

<llo_original>
// kernel: ase_forward.2
$region0: #{ase_forward.2}
  #allocation0 [shape = 'u32[]', space=smem, size = 0x4, offset = 0x4, fixed_abs, tag = 'smem constant byte address 0x4 - core index']
  #allocation1 [shape = 'u32[144,128]{1,0:T(1,128)}', space=vmem, size = 0x12000, scoped, tag = 'internal scratch']
  %s0 = inlined_call_operand.vmem [shape: bf16[2,16,128], index: 0, kind: input, shape index: {}]
  %s1 = inlined_call_operand.vmem [shape: bf16[2,128,128], index: 1, kind: input, shape index: {}]
  %s2 = inlined_call_operand.vmem [shape: f32[2,1,128], index: 2, kind: input, shape index: {}]
  %s3 = inlined_call_operand.vmem [shape: bf16[2,128,128], index: 3, kind: input, shape index: {}]
  %s4 = inlined_call_operand.vmem [shape: f32[2,1,128], index: 4, kind: input, shape index: {}]
  %s5 = inlined_call_operand.vmem [shape: f32[2,16,128], index: 5, kind: output, shape index: {}]
  %s6 = sld [smem:[#allocation0]]
  $region53: #{ase_forward.2} parent=0
    _
  %s8 = ssub.s32 1, %s6
  %s9 = scalar_select 0, %s8, %s6
  loop: start=0, step=1, limit=4
  $region2: #{ase_forward.2} parent=0 // loop_pre_header
    _
  $region3: #{ase_forward.2} parent=0 // loop_header
    %s11 = sphi 0, %s15
    %p12 = scmp.ge.s32.totalorder %s11, 4
    %s18 = sphi 0, %s30
    %s19 = sphi 0, %s26
    %s20 = sphi 0, %s18
    %s21 = sphi 0, %s19
    %s22 = sphi 0, %s20
    %s23 = sphi 0, %s21
    %s35 = sphi 0, %s37
    %s38 = sphi 0, %s35
    %s39 = sphi 0, %s38
    %s55 = sphi 0, %s39
    %s61 = sphi 0, %s63
    %s64 = sphi 0, %s61
    %s65 = sphi 0, %s64
    %s81 = sphi 0, %s65
    %s87 = sphi 0, %s89
    %s90 = sphi 0, %s87
    %s91 = sphi 0, %s90
    %s107 = sphi 0, %s91
    %s113 = sphi 0, %s115
    %s116 = sphi 0, %s113
    %s117 = sphi 0, %s116
    %s133 = sphi 0, %s117
    %s139 = sphi 0, %s141
    %s142 = sphi 0, %s139
    %s143 = sphi 0, %s142
    %s159 = sphi 0, %s143
    %s167 = sphi 0, %s169
    %s170 = sphi 0, %s167
    %s171 = sphi 0, %s170
    %s187 = sphi 0, %s171
  $region4: #{ase_forward.2} parent=0 // loop_header_branch
    %14 = sbr.rel (%p12) target = $region8
  $region5: #{ase_forward.2} parent=0 // loop_body
    %s16 = ssub.s32 %s11, 1
    %s17 = ssub.s32 %s11, 2
    %s24 = sadd.s32 1, %s19
    %p25 = scmp.ge.s32.totalorder %s24, 1
    %s26 = scalar_select %p25, 0, %s24
    %s27 = sadd.s32 1, %s18
    %s28 = scalar_select %p25, %s27, %s18
    %p29 = scmp.ge.s32.totalorder %s28, 2
    %s30 = scalar_select %p29, 0, %s28
    %s31 = ssub.s32 %s18, %s30
    %s32 = ssub.s32 %s19, %s26
    %s33 = sor.u32 %s31, %s32
    %p34 = scmp.eq.s32.totalorder %s33, 0
    %s36 = sadd.s32 %s35, 1
    %s37 = scalar_select %p34, %s35, %s36
    %p40 = pneg %p34
    %p41 = scmp.eq.s32.totalorder %s11, 1
    %p42 = por %p40, %p41
    %p43 = scmp.ne.s32.totalorder %s35, %s38
    %p44 = scmp.eq.s32.totalorder %s11, 0
    %p45 = por %p43, %p44
    %p46 = scmp.ne.s32.totalorder %s35, %s38
    %p47 = scmp.eq.s32.totalorder %s16, 1
    %p48 = por %p46, %p47
    %p49 = scmp.ne.s32.totalorder %s38, %s39
    %p50 = scmp.eq.s32.totalorder %s16, 0
    %p51 = por %p49, %p50
    %p52 = scmp.ne.s32.totalorder %s38, %s39
    %p53 = scmp.eq.s32.totalorder %s17, 1
    %p54 = por %p52, %p53
    %p56 = scmp.ne.s32.totalorder %s39, %s55
    %p57 = scmp.eq.s32.totalorder %s17, 0
    %p58 = por %p56, %p57
    %s59 = ssub.s32 %s18, %s30
    %p60 = scmp.eq.s32.totalorder %s59, 0
    %s62 = sadd.s32 %s61, 1
    %s63 = scalar_select %p60, %s61, %s62
    %p66 = pneg %p60
    %p67 = scmp.eq.s32.totalorder %s11, 1
    %p68 = por %p66, %p67
    %p69 = scmp.ne.s32.totalorder %s61, %s64
    %p70 = scmp.eq.s32.totalorder %s11, 0
    %p71 = por %p69, %p70
    %p72 = scmp.ne.s32.totalorder %s61, %s64
    %p73 = scmp.eq.s32.totalorder %s16, 1
    %p74 = por %p72, %p73
    %p75 = scmp.ne.s32.totalorder %s64, %s65
    %p76 = scmp.eq.s32.totalorder %s16, 0
    %p77 = por %p75, %p76
    %p78 = scmp.ne.s32.totalorder %s64, %s65
    %p79 = scmp.eq.s32.totalorder %s17, 1
    %p80 = por %p78, %p79
    %p82 = scmp.ne.s32.totalorder %s65, %s81
    %p83 = scmp.eq.s32.totalorder %s17, 0
    %p84 = por %p82, %p83
    %s85 = ssub.s32 %s18, %s30
    %p86 = scmp.eq.s32.totalorder %s85, 0
    %s88 = sadd.s32 %s87, 1
    %s89 = scalar_select %p86, %s87, %s88
    %p92 = pneg %p86
    %p93 = scmp.eq.s32.totalorder %s11, 1
    %p94 = por %p92, %p93
    %p95 = scmp.ne.s32.totalorder %s87, %s90
    %p96 = scmp.eq.s32.totalorder %s11, 0
    %p97 = por %p95, %p96
    %p98 = scmp.ne.s32.totalorder %s87, %s90
    %p99 = scmp.eq.s32.totalorder %s16, 1
    %p100 = por %p98, %p99
    %p101 = scmp.ne.s32.totalorder %s90, %s91
    %p102 = scmp.eq.s32.totalorder %s16, 0
    %p103 = por %p101, %p102
    %p104 = scmp.ne.s32.totalorder %s90, %s91
    %p105 = scmp.eq.s32.totalorder %s17, 1
    %p106 = por %p104, %p105
    %p108 = scmp.ne.s32.totalorder %s91, %s107
    %p109 = scmp.eq.s32.totalorder %s17, 0
    %p110 = por %p108, %p109
    %s111 = ssub.s32 %s18, %s30
    %p112 = scmp.eq.s32.totalorder %s111, 0
    %s114 = sadd.s32 %s113, 1
    %s115 = scalar_select %p112, %s113, %s114
    %p118 = pneg %p112
    %p119 = scmp.eq.s32.totalorder %s11, 1
    %p120 = por %p118, %p119
    %p121 = scmp.ne.s32.totalorder %s113, %s116
    %p122 = scmp.eq.s32.totalorder %s11, 0
    %p123 = por %p121, %p122
    %p124 = scmp.ne.s32.totalorder %s113, %s116
    %p125 = scmp.eq.s32.totalorder %s16, 1
    %p126 = por %p124, %p125
    %p127 = scmp.ne.s32.totalorder %s116, %s117
    %p128 = scmp.eq.s32.totalorder %s16, 0
    %p129 = por %p127, %p128
    %p130 = scmp.ne.s32.totalorder %s116, %s117
    %p131 = scmp.eq.s32.totalorder %s17, 1
    %p132 = por %p130, %p131
    %p134 = scmp.ne.s32.totalorder %s117, %s133
    %p135 = scmp.eq.s32.totalorder %s17, 0
    %p136 = por %p134, %p135
    %s137 = ssub.s32 %s18, %s30
    %p138 = scmp.eq.s32.totalorder %s137, 0
    %s140 = sadd.s32 %s139, 1
    %s141 = scalar_select %p138, %s139, %s140
    %p144 = pneg %p138
    %p145 = scmp.eq.s32.totalorder %s11, 1
    %p146 = por %p144, %p145
    %p147 = scmp.ne.s32.totalorder %s139, %s142
    %p148 = scmp.eq.s32.totalorder %s11, 0
    %p149 = por %p147, %p148
    %p150 = scmp.ne.s32.totalorder %s139, %s142
    %p151 = scmp.eq.s32.totalorder %s16, 1
    %p152 = por %p150, %p151
    %p153 = scmp.ne.s32.totalorder %s142, %s143
    %p154 = scmp.eq.s32.totalorder %s16, 0
    %p155 = por %p153, %p154
    %p156 = scmp.ne.s32.totalorder %s142, %s143
    %p157 = scmp.eq.s32.totalorder %s17, 1
    %p158 = por %p156, %p157
    %p160 = scmp.ne.s32.totalorder %s143, %s159
    %p161 = scmp.eq.s32.totalorder %s17, 0
    %p162 = por %p160, %p161
    %s163 = ssub.s32 %s18, %s30
    %s164 = ssub.s32 %s19, %s26
    %s165 = sor.u32 %s163, %s164
    %p166 = scmp.eq.s32.totalorder %s165, 0
    %s168 = sadd.s32 %s167, 1
    %s169 = scalar_select %p166, %s167, %s168
    %p172 = pneg %p166
    %p173 = scmp.eq.s32.totalorder %s11, 1
    %p174 = por %p172, %p173
    %p175 = scmp.ne.s32.totalorder %s167, %s170
    %p176 = scmp.eq.s32.totalorder %s11, 0
    %p177 = por %p175, %p176
    %p178 = scmp.ne.s32.totalorder %s167, %s170
    %p179 = scmp.eq.s32.totalorder %s16, 1
    %p180 = por %p178, %p179
    %p181 = scmp.ne.s32.totalorder %s170, %s171
    %p182 = scmp.eq.s32.totalorder %s16, 0
    %p183 = por %p181, %p182
    %p184 = scmp.ne.s32.totalorder %s170, %s171
    %p185 = scmp.eq.s32.totalorder %s17, 1
    %p186 = por %p184, %p185
    %p188 = scmp.ne.s32.totalorder %s171, %s187
    %p189 = scmp.eq.s32.totalorder %s17, 0
    %p190 = por %p188, %p189
    %p191 = scmp.le.s32.totalorder 1, %s11
    %p192 = scmp.lt.s32.totalorder %s11, 3
    %p193 = pnand %p191, %p192
    %p194 = pneg %p193
    // Predicated region
    $region9: #{ase_forward.2} parent=5 // pred_check
      _
    $region10: #{ase_forward.2} parent=5 // pred_check_branch
      %196 = sbr.rel (%p193) target = $region12
    $region11: #{ase_forward.2} parent=5 // pred_region
      %s197 = ssub.s32 %s11, 1
    $region12: #{ase_forward.2} parent=5 // pred_fallthru
      _
    %p198 = scmp.lt.s32.totalorder %s11, 2
    // Predicated region
    $region13: #{ase_forward.2} parent=5 // pred_check
      %p199 = pneg %p198
    $region14: #{ase_forward.2} parent=5 // pred_check_branch
      %201 = sbr.rel (%p199) target = $region16
    $region15: #{ase_forward.2} parent=5 // pred_region
      // Predicated region
      $region17: #{ase_forward.2} parent=15 // pred_check
        %p202 = pneg %p45
      $region18: #{ase_forward.2} parent=15 // pred_check_branch
        %204 = sbr.rel (%p202) target = $region20
      $region19: #{ase_forward.2} parent=15 // pred_region
        %s205 = smul.u32 2, %s19
        %p206 = scmp.lt.s32.totalorder %s18, 1
        %s207 = scalar_select %p206, %s18, 1
        %p208 = scmp.lt.s32.totalorder %s205, 1
        %s209 = scalar_select %p208, %s205, 1
        %s210 = smul.addr %s207, 2
        %s211 = sadd.s32 %s209, %s210
        %s212 = smul.addr %s211, 4
        %s213 = scalar_lea.vmem %s0, %s212
        %s214 = smul.u32 2, %s19
      $region20: #{ase_forward.2} parent=15 // pred_fallthru
        _
      // Predicated region
      $region21: #{ase_forward.2} parent=15 // pred_check
        %p215 = pneg %p71
      $region22: #{ase_forward.2} parent=15 // pred_check_branch
        %217 = sbr.rel (%p215) target = $region24
      $region23: #{ase_forward.2} parent=15 // pred_region
        %p218 = scmp.lt.s32.totalorder %s18, 1
        %s219 = scalar_select %p218, %s18, 1
        %s220 = smul.addr %s219, 16
        %s221 = smul.addr %s220, 4
        %s222 = scalar_lea.vmem %s1, %s221
      $region24: #{ase_forward.2} parent=15 // pred_fallthru
        _
      // Predicated region
      $region25: #{ase_forward.2} parent=15 // pred_check
        %p223 = pneg %p97
      $region26: #{ase_forward.2} parent=15 // pred_check_branch
        %225 = sbr.rel (%p223) target = $region28
      $region27: #{ase_forward.2} parent=15 // pred_region
        %p226 = scmp.lt.s32.totalorder %s18, 1
        %s227 = scalar_select %p226, %s18, 1
        %s228 = scalar_lea.vmem %s2, %s227
      $region28: #{ase_forward.2} parent=15 // pred_fallthru
        _
      // Predicated region
      $region29: #{ase_forward.2} parent=15 // pred_check
        %p229 = pneg %p123
      $region30: #{ase_forward.2} parent=15 // pred_check_branch
        %231 = sbr.rel (%p229) target = $region32
      $region31: #{ase_forward.2} parent=15 // pred_region
        %p232 = scmp.lt.s32.totalorder %s18, 1
        %s233 = scalar_select %p232, %s18, 1
        %s234 = smul.addr %s233, 16
        %s235 = smul.addr %s234, 4
        %s236 = scalar_lea.vmem %s3, %s235
      $region32: #{ase_forward.2} parent=15 // pred_fallthru
        _
      // Predicated region
      $region33: #{ase_forward.2} parent=15 // pred_check
        %p237 = pneg %p149
      $region34: #{ase_forward.2} parent=15 // pred_check_branch
        %239 = sbr.rel (%p237) target = $region36
      $region35: #{ase_forward.2} parent=15 // pred_region
        %p240 = scmp.lt.s32.totalorder %s18, 1
        %s241 = scalar_select %p240, %s18, 1
        %s242 = scalar_lea.vmem %s4, %s241
      $region36: #{ase_forward.2} parent=15 // pred_fallthru
        _
    $region16: #{ase_forward.2} parent=5 // pred_fallthru
      _
    %p243 = scmp.le.s32.totalorder 1, %s11
    %p244 = scmp.lt.s32.totalorder %s11, 3
    %p245 = pnand %p243, %p244
    %p246 = pneg %p245
    // Predicated region
    $region37: #{ase_forward.2} parent=5 // pred_check
      _
    $region38: #{ase_forward.2} parent=5 // pred_check_branch
      %248 = sbr.rel (%p245) target = $region40
    $region39: #{ase_forward.2} parent=5 // pred_region
      %s249 = ssub.s32 %s11, 1
      %s250 = smul.u32 2, %s21
      %p251 = scmp.lt.s32.totalorder %s20, 1
      %s252 = scalar_select %p251, %s20, 1
      %p253 = scmp.lt.s32.totalorder %s250, 1
      %s254 = scalar_select %p253, %s250, 1
      %s255 = smul.addr %s252, 2
      %s256 = sadd.s32 %s254, %s255
      %s257 = smul.addr %s256, 4
      %s258 = scalar_lea.vmem %s0, %s257
      %p259 = pneg %p51
      %p260 = pneg %p48
      %p261 = scmp.lt.s32.totalorder %s20, 1
      %s262 = scalar_select %p261, %s20, 1
      %s263 = smul.addr %s262, 16
      %s264 = smul.addr %s263, 4
      %s265 = scalar_lea.vmem %s1, %s264
      %p266 = pneg %p77
      %p267 = pneg %p74
      %p268 = scmp.lt.s32.totalorder %s20, 1
      %s269 = scalar_select %p268, %s20, 1
      %s270 = scalar_lea.vmem %s2, %s269
      %p271 = pneg %p103
      %p272 = pneg %p100
      %p273 = scmp.lt.s32.totalorder %s20, 1
      %s274 = scalar_select %p273, %s20, 1
      %s275 = smul.addr %s274, 16
      %s276 = smul.addr %s275, 4
      %s277 = scalar_lea.vmem %s3, %s276
      %p278 = pneg %p129
      %p279 = pneg %p126
      %p280 = scmp.lt.s32.totalorder %s20, 1
      %s281 = scalar_select %p280, %s20, 1
      %s282 = scalar_lea.vmem %s4, %s281
      %p283 = pneg %p155
      %p284 = pneg %p152
      %p285 = pneg %p183
      %p286 = pneg %p180
      %s287 = smul.u32 2, %s21
      %p288 = scmp.lt.s32.totalorder %s20, 1
      %s289 = scalar_select %p288, %s20, 1
      %p290 = scmp.lt.s32.totalorder %s287, 1
      %s291 = scalar_select %p290, %s287, 1
      %s292 = smul.addr %s289, 2
      %s293 = sadd.s32 %s291, %s292
      %s294 = smul.addr %s293, 8
      %s295 = scalar_lea.vmem %s5, %s294
      %s296 = smul.u32 2, %s21
      %p297 = scmp.lt.s32.totalorder %s20, 1
      %s298 = scalar_select %p297, %s20, 1
      %p299 = scmp.lt.s32.totalorder %s296, 1
      %s300 = scalar_select %p299, %s296, 1
      %s301 = smul.addr %s298, 2
      %s302 = sadd.s32 %s300, %s301
      %s303 = smul.addr %s302, 4
      %s304 = scalar_lea.vmem %s0, %s303
      %s305 = smul.u32 2, %s21
      %p306 = scmp.lt.s32.totalorder %s20, 1
      %s307 = scalar_select %p306, %s20, 1
      %s308 = smul.addr %s307, 16
      %s309 = smul.addr %s308, 4
      %s310 = scalar_lea.vmem %s1, %s309
      %p311 = scmp.lt.s32.totalorder %s20, 1
      %s312 = scalar_select %p311, %s20, 1
      %s313 = scalar_lea.vmem %s2, %s312
      %p314 = scmp.lt.s32.totalorder %s20, 1
      %s315 = scalar_select %p314, %s20, 1
      %s316 = smul.addr %s315, 16
      %s317 = smul.addr %s316, 4
      %s318 = scalar_lea.vmem %s3, %s317
      %p319 = scmp.lt.s32.totalorder %s20, 1
      %s320 = scalar_select %p319, %s20, 1
      %s321 = scalar_lea.vmem %s4, %s320
      %s322 = smul.u32 2, %s21
      %p323 = scmp.lt.s32.totalorder %s20, 1
      %s324 = scalar_select %p323, %s20, 1
      %p325 = scmp.lt.s32.totalorder %s322, 1
      %s326 = scalar_select %p325, %s322, 1
      %s327 = smul.addr %s324, 2
      %s328 = sadd.s32 %s326, %s327
      %s329 = smul.addr %s328, 8
      %s330 = scalar_lea.vmem %s5, %s329
      %s331 = smul.u32 2, %s21
      %v333 = vld [vmem:[%s304] sm:$0xf]
      %v334 = vld [vmem:[%s304 + $0x4] sm:$0xf]
      %v335 = vld [vmem:[%s310] sm:$0xf]
      %v336 = vld [vmem:[%s310 + $0x4] sm:$0xf]
      %v337 = vld [vmem:[%s310 + $0x8] sm:$0xf]
      %v338 = vld [vmem:[%s310 + $0xc] sm:$0xf]
      %v339 = vld [vmem:[%s310 + $0x10] sm:$0xf]
      %v340 = vld [vmem:[%s310 + $0x14] sm:$0xf]
      %v341 = vld [vmem:[%s310 + $0x18] sm:$0xf]
      %v342 = vld [vmem:[%s310 + $0x1c] sm:$0xf]
      %v343 = vld [vmem:[%s310 + $0x20] sm:$0xf]
      %v344 = vld [vmem:[%s310 + $0x24] sm:$0xf]
      %v345 = vld [vmem:[%s310 + $0x28] sm:$0xf]
      %v346 = vld [vmem:[%s310 + $0x2c] sm:$0xf]
      %v347 = vld [vmem:[%s310 + $0x30] sm:$0xf]
      %v348 = vld [vmem:[%s310 + $0x34] sm:$0xf]
      %v349 = vld [vmem:[%s310 + $0x38] sm:$0xf]
      %v350 = vld [vmem:[%s310 + $0x3c] sm:$0xf]
      %v351 = vld [vmem:[%s313] sm:$0x1]
      %v352 = vld [vmem:[%s318] sm:$0xf]
      %v353 = vld [vmem:[%s318 + $0x4] sm:$0xf]
      %v354 = vld [vmem:[%s318 + $0x8] sm:$0xf]
      %v355 = vld [vmem:[%s318 + $0xc] sm:$0xf]
      %v356 = vld [vmem:[%s318 + $0x10] sm:$0xf]
      %v357 = vld [vmem:[%s318 + $0x14] sm:$0xf]
      %v358 = vld [vmem:[%s318 + $0x18] sm:$0xf]
      %v359 = vld [vmem:[%s318 + $0x1c] sm:$0xf]
      %v360 = vld [vmem:[%s318 + $0x20] sm:$0xf]
      %v361 = vld [vmem:[%s318 + $0x24] sm:$0xf]
      %v362 = vld [vmem:[%s318 + $0x28] sm:$0xf]
      %v363 = vld [vmem:[%s318 + $0x2c] sm:$0xf]
      %v364 = vld [vmem:[%s318 + $0x30] sm:$0xf]
      %v365 = vld [vmem:[%s318 + $0x34] sm:$0xf]
      %v366 = vld [vmem:[%s318 + $0x38] sm:$0xf]
      %v367 = vld [vmem:[%s318 + $0x3c] sm:$0xf]
      %v368 = vld [vmem:[%s321] sm:$0x1]
      %v370 = vlaneseq
      %v371 = vshrl.u32 %v370, 7
      %v372 = vsub.s32 0, %v371
      %v373 = vrot.slane %v351, %v372
      %v377 = vunpack.c.l.b16 %v333
      %v378 = vunpack.c.l.b16 %v334
      %v379 = vpack.c.b16 %v378, %v377
      %v397 = vunpack.c.l.b16 %v335
      %v398 = vunpack.c.l.b16 %v336
      %v399 = vunpack.c.l.b16 %v337
      %v400 = vunpack.c.l.b16 %v338
      %v401 = vunpack.c.l.b16 %v339
      %v402 = vunpack.c.l.b16 %v340
      %v403 = vunpack.c.l.b16 %v341
      %v404 = vunpack.c.l.b16 %v342
      %v405 = vunpack.c.l.b16 %v343
      %v406 = vunpack.c.l.b16 %v344
      %v407 = vunpack.c.l.b16 %v345
      %v408 = vunpack.c.l.b16 %v346
      %v409 = vunpack.c.l.b16 %v347
      %v410 = vunpack.c.l.b16 %v348
      %v411 = vunpack.c.l.b16 %v349
      %v412 = vunpack.c.l.b16 %v350
      %v413 = vpack.c.b16 %v398, %v397
      %v414 = vpack.c.b16 %v400, %v399
      %v415 = vpack.c.b16 %v402, %v401
      %v416 = vpack.c.b16 %v404, %v403
      %v417 = vpack.c.b16 %v406, %v405
      %v418 = vpack.c.b16 %v408, %v407
      %v419 = vpack.c.b16 %v410, %v409
      %v420 = vpack.c.b16 %v412, %v411
      %429 = vmatprep.subr.bf16.mxu0 0
      %430 = vmatpush1.bf16.msra.mxu0 %v413
      %431 = vmatprep.subr.bf16.mxu0 0
      %432 = vmatpush1.bf16.msra.mxu0 %v414
      %433 = vmatprep.subr.bf16.mxu0 0
      %434 = vmatpush1.bf16.msra.mxu0 %v415
      %435 = vmatprep.subr.bf16.mxu0 0
      %436 = vmatpush1.bf16.msra.mxu0 %v416
      %437 = vmatprep.subr.bf16.mxu0 0
      %438 = vmatpush1.bf16.msra.mxu0 %v417
      %439 = vmatprep.subr.bf16.mxu0 0
      %440 = vmatpush1.bf16.msra.mxu0 %v418
      %441 = vmatprep.subr.bf16.mxu0 0
      %442 = vmatpush1.bf16.msra.mxu0 %v419
      %443 = vmatprep.subr.bf16.mxu0 0
      %444 = vmatpush1.bf16.msra.mxu0 %v420
      %445 = vmatprep.subr.bf16.mxu0 0
      %446 = vmatpush1.bf16.msra.mxu0 0
      %447 = vmatprep.subr.bf16.mxu0 0
      %448 = vmatpush1.bf16.msra.mxu0 0
      %449 = vmatprep.subr.bf16.mxu0 0
      %450 = vmatpush1.bf16.msra.mxu0 0
      %451 = vmatprep.subr.bf16.mxu0 0
      %452 = vmatpush1.bf16.msra.mxu0 0
      %453 = vmatprep.subr.bf16.mxu0 0
      %454 = vmatpush1.bf16.msra.mxu0 0
      %455 = vmatprep.subr.bf16.mxu0 0
      %456 = vmatpush1.bf16.msra.mxu0 0
      %457 = vmatprep.subr.bf16.mxu0 0
      %458 = vmatpush1.bf16.msra.mxu0 0
      %459 = vmatprep.subr.bf16.mxu0 0
      %460 = vmatpush1.bf16.msra.mxu0 0
      %461 = vmatprep.mubr.bf16.mxu0 0
      %462 = vmatmul.mubr.bf16.gmra.mrb[0].mxu0 %v379
      %v463 = vpop.f32.mrb[0].mxu0
      %v464 = vadd.f32 %v373, %v463
      %v465 = vpop.f32.mrb[0].mxu0
      %v466 = vpop.f32.mrb[0].mxu0
      %v467 = vadd.f32 %v373, %v466
      %v468 = vpop.f32.mrb[0].mxu0
      %469 = vdwg.mxu0
      %v470 = vmax.f32 %v464, 0.0
      %v471 = vmax.f32 %v467, 0.0
      %v472 = vpack.c.bf16 %v471, %v470
      %v474 = vlaneseq
      %v475 = vshrl.u32 %v474, 7
      %v476 = vsub.s32 0, %v475
      %v477 = vrot.slane %v368, %v476
      %v495 = vunpack.c.l.b16 %v352
      %v496 = vunpack.c.l.b16 %v353
      %v497 = vunpack.c.l.b16 %v354
      %v498 = vunpack.c.l.b16 %v355
      %v499 = vunpack.c.l.b16 %v356
      %v500 = vunpack.c.l.b16 %v357
      %v501 = vunpack.c.l.b16 %v358
      %v502 = vunpack.c.l.b16 %v359
      %v503 = vunpack.c.l.b16 %v360
      %v504 = vunpack.c.l.b16 %v361
      %v505 = vunpack.c.l.b16 %v362
      %v506 = vunpack.c.l.b16 %v363
      %v507 = vunpack.c.l.b16 %v364
      %v508 = vunpack.c.l.b16 %v365
      %v509 = vunpack.c.l.b16 %v366
      %v510 = vunpack.c.l.b16 %v367
      %v511 = vpack.c.b16 %v496, %v495
      %v512 = vpack.c.b16 %v498, %v497
      %v513 = vpack.c.b16 %v500, %v499
      %v514 = vpack.c.b16 %v502, %v501
      %v515 = vpack.c.b16 %v504, %v503
      %v516 = vpack.c.b16 %v506, %v505
      %v517 = vpack.c.b16 %v508, %v507
      %v518 = vpack.c.b16 %v510, %v509
      %527 = vmatprep.subr.bf16.mxu0 0
      %528 = vmatpush1.bf16.msra.mxu0 %v511
      %529 = vmatprep.subr.bf16.mxu0 0
      %530 = vmatpush1.bf16.msra.mxu0 %v512
      %531 = vmatprep.subr.bf16.mxu0 0
      %532 = vmatpush1.bf16.msra.mxu0 %v513
      %533 = vmatprep.subr.bf16.mxu0 0
      %534 = vmatpush1.bf16.msra.mxu0 %v514
      %535 = vmatprep.subr.bf16.mxu0 0
      %536 = vmatpush1.bf16.msra.mxu0 %v515
      %537 = vmatprep.subr.bf16.mxu0 0
      %538 = vmatpush1.bf16.msra.mxu0 %v516
      %539 = vmatprep.subr.bf16.mxu0 0
      %540 = vmatpush1.bf16.msra.mxu0 %v517
      %541 = vmatprep.subr.bf16.mxu0 0
      %542 = vmatpush1.bf16.msra.mxu0 %v518
      %543 = vmatprep.subr.bf16.mxu0 0
      %544 = vmatpush1.bf16.msra.mxu0 0
      %545 = vmatprep.subr.bf16.mxu0 0
      %546 = vmatpush1.bf16.msra.mxu0 0
      %547 = vmatprep.subr.bf16.mxu0 0
      %548 = vmatpush1.bf16.msra.mxu0 0
      %549 = vmatprep.subr.bf16.mxu0 0
      %550 = vmatpush1.bf16.msra.mxu0 0
      %551 = vmatprep.subr.bf16.mxu0 0
      %552 = vmatpush1.bf16.msra.mxu0 0
      %553 = vmatprep.subr.bf16.mxu0 0
      %554 = vmatpush1.bf16.msra.mxu0 0
      %555 = vmatprep.subr.bf16.mxu0 0
      %556 = vmatpush1.bf16.msra.mxu0 0
      %557 = vmatprep.subr.bf16.mxu0 0
      %558 = vmatpush1.bf16.msra.mxu0 0
      %559 = vmatprep.mubr.bf16.mxu0 0
      %560 = vmatmul.mubr.bf16.gmra.mrb[0].mxu0 %v472
      %v561 = vpop.f32.mrb[0].mxu0
      %v562 = vadd.f32 %v477, %v561
      %v563 = vpop.f32.mrb[0].mxu0
      %v564 = vpop.f32.mrb[0].mxu0
      %v565 = vadd.f32 %v477, %v564
      %v566 = vpop.f32.mrb[0].mxu0
      %567 = vdwg.mxu0
      %v568 = vmul.f32 %v562, %v562
      %v569 = vmul.f32 %v565, %v565
      %570 = vadd.xlane.f32.xlu0 %v568
      %v571 = vpop.xlane.xlu0 %570
      %572 = vadd.xlane.f32.xlu0 %v569
      %v573 = vpop.xlane.xlu0 %572
      %v574 = vmax.f32 %v571, 1e-24
      %v575 = vmax.f32 %v573, 1e-24
      %v576 = vrsqrt.pop %v574
      %v577 = vrsqrt.pop %v575
      %v578 = vmul.f32 %v562, %v576
      %v579 = vmul.f32 %v565, %v577
      %580 = vst [vmem:[%s330] sm:$0xff] %v578
      %581 = vst [vmem:[%s330 + $0x8] sm:$0xff] %v579
      %s582 = smul.u32 2, %s21
      %p583 = scmp.lt.s32.totalorder %s20, 1
      %s584 = scalar_select %p583, %s20, 1
      %p585 = scmp.lt.s32.totalorder %s582, 1
      %s586 = scalar_select %p585, %s582, 1
      %s587 = smul.addr %s584, 2
      %s588 = sadd.s32 %s586, %s587
      %s589 = smul.addr %s588, 8
      %s590 = scalar_lea.vmem %s5, %s589
      // Predicated region
      $region41: #{ase_forward.2} parent=39 // pred_check
        %p591 = pneg %p180
      $region42: #{ase_forward.2} parent=39 // pred_check_branch
        %593 = sbr.rel (%p591) target = $region44
      $region43: #{ase_forward.2} parent=39 // pred_region
        %s594 = smul.u32 2, %s21
      $region44: #{ase_forward.2} parent=39 // pred_fallthru
        _
    $region40: #{ase_forward.2} parent=5 // pred_fallthru
      _
    %p595 = scmp.le.s32.totalorder 2, %s11
    // Predicated region
    $region45: #{ase_forward.2} parent=5 // pred_check
      %p596 = pneg %p595
    $region46: #{ase_forward.2} parent=5 // pred_check_branch
      %598 = sbr.rel (%p596) target = $region48
    $region47: #{ase_forward.2} parent=5 // pred_region
      %s599 = ssub.s32 %s11, 2
      // Predicated region
      $region49: #{ase_forward.2} parent=47 // pred_check
        %p600 = pneg %p186
      $region50: #{ase_forward.2} parent=47 // pred_check_branch
        %602 = sbr.rel (%p600) target = $region52
      $region51: #{ase_forward.2} parent=47 // pred_region
        %s603 = smul.u32 2, %s23
        %p604 = scmp.lt.s32.totalorder %s22, 1
        %s605 = scalar_select %p604, %s22, 1
        %p606 = scmp.lt.s32.totalorder %s603, 1
        %s607 = scalar_select %p606, %s603, 1
        %s608 = smul.addr %s605, 2
        %s609 = sadd.s32 %s607, %s608
        %s610 = smul.addr %s609, 8
        %s611 = scalar_lea.vmem %s5, %s610
      $region52: #{ase_forward.2} parent=47 // pred_fallthru
        _
    $region48: #{ase_forward.2} parent=5 // pred_fallthru
      _
  $region6: #{ase_forward.2} parent=0 // loop_footer
    %s15 = sadd.s32 1, %s11
  $region7: #{ase_forward.2} parent=0 // loop_footer_branch
    %10 = sbr.rel target = $region3
  $region8: #{ase_forward.2} parent=0 // loop_exit
    _

// kernel: ase_forward.3
$region0: #{ase_forward.3}
  #allocation0 [shape = 'u32[]', space=smem, size = 0x4, offset = 0x4, fixed_abs, tag = 'smem constant byte address 0x4 - core index']
  #allocation1 [shape = 'u32[144,128]{1,0:T(1,128)}', space=vmem, size = 0x12000, scoped, tag = 'internal scratch']
  #allocation2 [shape = 'f32[1,1]{1,0:T(1,128)S(6)}', space=smem, size = 0x200, scoped, tag = 'scoped memory for ase_forward.3']
  %s0 = inlined_call_operand.vmem [shape: f32[2,16,128], index: 0, kind: input, shape index: {}, may-alias: {0,1}]
  %s1 = inlined_call_operand.vmem [shape: f32[2,16,128], index: 1, kind: input, shape index: {}, may-alias: {0,1}]
  %s2 = inlined_call_operand.vmem [shape: s32[16,1], index: 2, kind: input, shape index: {}]
  %s3 = inlined_call_operand.vmem [shape: s32[1,16], index: 3, kind: input, shape index: {}]
  %s4 = inlined_call_operand.<no memory space> [shape: f32[1,1], index: 4, kind: input, shape index: {}]
  %s5 = inlined_call_operand.hbm [shape: f32[1,1], index: 5, kind: output, shape index: {}]
  %s6 = sld [smem:[#allocation0]]
  $region30: #{ase_forward.3} parent=0
    _
  %s8 = ssub.s32 1, %s6
  %s9 = scalar_select 0, %s8, %s6
  %10 = sst [smem:[#allocation2]] %s4
  $region1: #{ase_forward.3} parent=0
    #allocation3 [shape = 'u8[512]{0}', space=vmem, size = 0x400, scoped, tag = 'output window, operand 0, single buffered']
    #allocation4 [shape = 's32[1]{0}', space=sflag, size = 0x4, scoped, tag = 'scoped memory for ase_forward.3']
    %11 = vsyncpa [#allocation4], 0
    // Predicated region
    $region2: #{ase_forward.3} parent=1 // pred_check
      _
    $region3: #{ase_forward.3} parent=1 // pred_check_branch
      %13 = sbr.rel (0) target = $region5
    $region4: #{ase_forward.3} parent=1 // pred_region
      _
    $region5: #{ase_forward.3} parent=1 // pred_fallthru
      _
    // Predicated region
    $region6: #{ase_forward.3} parent=1 // pred_check
      _
    $region7: #{ase_forward.3} parent=1 // pred_check_branch
      %15 = sbr.rel (0) target = $region9
    $region8: #{ase_forward.3} parent=1 // pred_region
      %s16 = scalar_lea.vmem %s1, 16
    $region9: #{ase_forward.3} parent=1 // pred_fallthru
      _
    // Predicated region
    $region10: #{ase_forward.3} parent=1 // pred_check
      _
    $region11: #{ase_forward.3} parent=1 // pred_check_branch
      %18 = sbr.rel (0) target = $region13
    $region12: #{ase_forward.3} parent=1 // pred_region
      _
    $region13: #{ase_forward.3} parent=1 // pred_fallthru
      _
    // Predicated region
    $region14: #{ase_forward.3} parent=1 // pred_check
      _
    $region15: #{ase_forward.3} parent=1 // pred_check_branch
      %20 = sbr.rel (0) target = $region17
    $region16: #{ase_forward.3} parent=1 // pred_region
      _
    $region17: #{ase_forward.3} parent=1 // pred_fallthru
      _
    // Predicated region
    $region18: #{ase_forward.3} parent=1 // pred_check
      _
    $region19: #{ase_forward.3} parent=1 // pred_check_branch
      %22 = sbr.rel (0) target = $region21
    $region20: #{ase_forward.3} parent=1 // pred_region
      _
    $region21: #{ase_forward.3} parent=1 // pred_fallthru
      _
    %s23 = scalar_lea.vmem %s1, 16
    %s24 = scalar_lea.vmem %s1, 16
    %v26 = vld [vmem:[%s0] sm:$0xff]
    %v27 = vld [vmem:[%s0 + $0x8] sm:$0xff]
    %v28 = vld [vmem:[%s24] sm:$0xff]
    %v29 = vld [vmem:[%s24 + $0x8] sm:$0xff]
    %s30 = sld [smem:[#allocation2]]
    %v31 = vlaneseq
    %v32 = vshrl.u32 %v31, 7
    %v33 = vadd.s32 %v32, 8
    %vm34 = vcmp.lt.s32.totalorder %v32, 8
    %vm35 = vcmp.lt.s32.totalorder %v33, 8
    %v36 = vlaneseq
    %v37 = vand.u32 %v36, 127
    %vm38 = vcmp.lt.s32.totalorder %v37, 8
    %v39 = vsel %vm34, 1, 0
    %v40 = vsel %vm35, 1, 0
    %v41 = vcvt.s32.f32 %v39
    %v42 = vcvt.s32.f32 %v40
    %v43 = vsel %vm38, 1, 0
    %v44 = vcvt.s32.f32 %v43
    %v45 = vpack.c.bf16 %v27, %v26
    %v46 = vpack.c.bf16 %v29, %v28
    %47 = vmatprep.subr.bf16.mxu0 0
    %48 = vmatpush1.bf16.xpose.msra.mxu0 %v46
    %49 = vmatprep.subr.bf16.mxu0 0
    %50 = vmatpush1.bf16.xpose.msra.mxu0 0
    %51 = vmatprep.subr.bf16.mxu0 0
    %52 = vmatpush1.bf16.xpose.msra.mxu0 0
    %53 = vmatprep.subr.bf16.mxu0 0
    %54 = vmatpush1.bf16.xpose.msra.mxu0 0
    %55 = vmatprep.subr.bf16.mxu0 0
    %56 = vmatpush1.bf16.xpose.msra.mxu0 0
    %57 = vmatprep.subr.bf16.mxu0 0
    %58 = vmatpush1.bf16.xpose.msra.mxu0 0
    %59 = vmatprep.subr.bf16.mxu0 0
    %60 = vmatpush1.bf16.xpose.msra.mxu0 0
    %61 = vmatprep.subr.bf16.mxu0 0
    %62 = vmatpush1.bf16.xpose.msra.mxu0 0
    %63 = vmatprep.subr.bf16.mxu0 0
    %64 = vmatpush1.bf16.xpose.msra.mxu0 0
    %65 = vmatprep.subr.bf16.mxu0 0
    %66 = vmatpush1.bf16.xpose.msra.mxu0 0
    %67 = vmatprep.subr.bf16.mxu0 0
    %68 = vmatpush1.bf16.xpose.msra.mxu0 0
    %69 = vmatprep.subr.bf16.mxu0 0
    %70 = vmatpush1.bf16.xpose.msra.mxu0 0
    %71 = vmatprep.subr.bf16.mxu0 0
    %72 = vmatpush1.bf16.xpose.msra.mxu0 0
    %73 = vmatprep.subr.bf16.mxu0 0
    %74 = vmatpush1.bf16.xpose.msra.mxu0 0
    %75 = vmatprep.subr.bf16.mxu0 0
    %76 = vmatpush1.bf16.xpose.msra.mxu0 0
    %77 = vmatprep.subr.bf16.mxu0 0
    %78 = vmatpush1.bf16.xpose.msra.mxu0 0
    %79 = vmatprep.mubr.bf16.mxu0 0
    %80 = vmatmul.mubr.bf16.gmra.mrb[0].mxu0 %v45
    %v81 = vpop.f32.mrb[0].mxu0
    %v82 = vadd.f32 0.0, %v81
    %v83 = vpop.f32.mrb[0].mxu0
    %v84 = vpop.f32.mrb[0].mxu0
    %v85 = vadd.f32 0.0, %v84
    %v86 = vpop.f32.mrb[0].mxu0
    %87 = vdwg.mxu0
    %v88 = vstv %s30
    %v89 = vmul.f32 %v82, %v88
    %v90 = vmul.f32 %v85, %v88
    %v91 = vld [vmem:[%s2] sm:$0xff]
    %v92 = vld [vmem:[%s2 + $0x8] sm:$0xff]
    %v93 = vld [vmem:[%s3] sm:$0x1]
    %94 = vset.pattern.permute.xlu0 0
    %95 = vperm.xlu0 %94, %v91
    %v96 = vpop.permute.xlu0 %95
    %97 = vset.pattern.permute.xlu0 0
    %98 = vperm.xlu0 %97, %v92
    %v99 = vpop.permute.xlu0 %98
    %v100 = vlaneseq
    %v101 = vshrl.u32 %v100, 7
    %v102 = vsub.s32 0, %v101
    %v103 = vrot.slane %v93, %v102
    %vm104 = vcmp.eq.s32.totalorder %v96, %v103
    %vm105 = vcmp.eq.s32.totalorder %v99, %v103
    %v106 = vsel %vm104, 1, 0
    %v107 = vsel %vm105, 1, 0
    %v108 = vcvt.s32.f32 %v106
    %v109 = vcvt.s32.f32 %v107
    %v110 = vmul.f32 %v108, %v41
    %v111 = vmul.f32 %v109, %v42
    %v112 = vmul.f32 %v110, %v44
    %v113 = vmul.f32 %v111, %v44
    %vm114 = vcmask 130048
    %v115 = vsel %vm114, %v108, 0.0
    %116 = vadd.xlane.f32.xlu0 %v115
    %v117 = vpop.xlane.xlu0 %116
    %v118 = vsel %vm114, %v109, 0.0
    %119 = vadd.xlane.f32.xlu0 %v118
    %v120 = vpop.xlane.xlu0 %119
    %v121 = vrcp.pop %v117
    %v122 = vmul.f32 %v112, %v121
    %v123 = vrcp.pop %v120
    %v124 = vmul.f32 %v113, %v123
    %v125 = vadd.f32 %v115, %v118
    %v126 = vrot.slane %v125, 4
    %v127 = vadd.f32 %v125, %v126
    %v128 = vrot.slane %v127, 2
    %v129 = vadd.f32 %v127, %v128
    %v130 = vrot.slane %v129, 1
    %v131 = vadd.f32 %v129, %v130
    %v132 = vrcp.pop %v131
    %v133 = vmul.f32 %v112, %v132
    %v134 = vmul.f32 %v113, %v132
    %vm135 = vcmp.eq.s32.totalorder %v43, 1
    %v136 = vsel %vm135, %v89, -1e+30
    %v137 = vsel %vm135, %v90, -1e+30
    %v138 = vsel %vm114, %v136, -inf
    %139 = vmax.xlane.f32.xlu0 %v138
    %v140 = vpop.xlane.xlu0 %139
    %v141 = vsel %vm114, %v137, -inf
    %142 = vmax.xlane.f32.xlu0 %v141
    %v143 = vpop.xlane.xlu0 %142
    %v144 = vsub.f32 %v136, %v140
    %v145 = vsub.f32 %v137, %v143
    %v146 = vmul.f32 %v144, 1.442695
    %v147 = vpow.pop %v146
    %v148 = vmul.f32 %v145, 1.442695
    %v149 = vpow.pop %v148
    %v150 = vsel %vm114, %v147, 0.0
    %151 = vadd.xlane.f32.xlu0 %v150
    %v152 = vpop.xlane.xlu0 %151
    %v153 = vsel %vm114, %v149, 0.0
    %154 = vadd.xlane.f32.xlu0 %v153
    %v155 = vpop.xlane.xlu0 %154
    %v156 = vlog2.pop %v152
    %v157 = vmul.f32 %v156, 0.6931472
    %v158 = vlog2.pop %v155
    %v159 = vmul.f32 %v158, 0.6931472
    %v160 = vsub.f32 %v144, %v157
    %v161 = vsub.f32 %v145, %v159
    %v162 = vmul.f32 %v160, %v122
    %v163 = vmul.f32 %v161, %v124
    %v164 = vsel %vm114, %v162, 0.0
    %165 = vadd.xlane.f32.xlu0 %v164
    %v166 = vpop.xlane.xlu0 %165
    %v167 = vsel %vm114, %v163, 0.0
    %168 = vadd.xlane.f32.xlu0 %v167
    %v169 = vpop.xlane.xlu0 %168
    %v170 = vadd.f32 %v166, %v169
    %v171 = vrot.slane %v170, 4
    %v172 = vadd.f32 %v170, %v171
    %v173 = vrot.slane %v172, 2
    %v174 = vadd.f32 %v172, %v173
    %v175 = vrot.slane %v174, 1
    %v176 = vadd.f32 %v174, %v175
    %v177 = vsub.f32 0.0, %v176
    %v178 = vmul.f32 %v177, 0.125
    %vm179 = vcmp.eq.s32.totalorder %v39, 1
    %vm180 = vcmp.eq.s32.totalorder %v40, 1
    %v181 = vsel %vm179, %v89, -1e+30
    %v182 = vsel %vm180, %v90, -1e+30
    %v183 = vsel %vm114, %v181, -inf
    %v184 = vsel %vm114, %v182, -inf
    %v185 = vmax.f32 %v183, %v184
    %v186 = vrot.slane %v185, 4
    %v187 = vmax.f32 %v185, %v186
    %v188 = vrot.slane %v187, 2
    %v189 = vmax.f32 %v187, %v188
    %v190 = vrot.slane %v189, 1
    %v191 = vmax.f32 %v189, %v190
    %v192 = vsub.f32 %v181, %v191
    %v193 = vsub.f32 %v182, %v191
    %v194 = vmul.f32 %v192, 1.442695
    %v195 = vpow.pop %v194
    %v196 = vmul.f32 %v193, 1.442695
    %v197 = vpow.pop %v196
    %v198 = vsel %vm114, %v195, 0.0
    %v199 = vsel %vm114, %v197, 0.0
    %v200 = vadd.f32 %v198, %v199
    %v201 = vrot.slane %v200, 4
    %v202 = vadd.f32 %v200, %v201
    %v203 = vrot.slane %v202, 2
    %v204 = vadd.f32 %v202, %v203
    %v205 = vrot.slane %v204, 1
    %v206 = vadd.f32 %v204, %v205
    %v207 = vlog2.pop %v206
    %v208 = vmul.f32 %v207, 0.6931472
    %v209 = vsub.f32 %v192, %v208
    %v210 = vsub.f32 %v193, %v208
    %v211 = vmul.f32 %v209, %v133
    %v212 = vmul.f32 %v210, %v134
    %v213 = vsel %vm114, %v211, 0.0
    %214 = vadd.xlane.f32.xlu0 %v213
    %v215 = vpop.xlane.xlu0 %214
    %v216 = vsel %vm114, %v212, 0.0
    %217 = vadd.xlane.f32.xlu0 %v216
    %v218 = vpop.xlane.xlu0 %217
    %v219 = vadd.f32 %v215, %v218
    %v220 = vrot.slane %v219, 4
    %v221 = vadd.f32 %v219, %v220
    %v222 = vrot.slane %v221, 2
    %v223 = vadd.f32 %v221, %v222
    %v224 = vrot.slane %v223, 1
    %v225 = vadd.f32 %v223, %v224
    %v226 = vsub.f32 0.0, %v225
    %v227 = vmul.f32 %v226, 0.125
    %v228 = vadd.f32 %v178, %v227
    %v229 = vmul.f32 %v228, 0.5
    %v230 = vmul.f32 %v26, %v41
    %v231 = vmul.f32 %v27, %v42
    %v232 = vmul.f32 %v28, %v41
    %v233 = vmul.f32 %v29, %v42
    %v234 = vand.u32 2147483647, %v230
    %v235 = vand.u32 2147483647, %v231
    %236 = vadd.xlane.f32.xlu0 %v234
    %v237 = vpop.xlane.xlu0 %236
    %238 = vadd.xlane.f32.xlu0 %v235
    %v239 = vpop.xlane.xlu0 %238
    %v240 = vadd.f32 %v237, %v239
    %v241 = vrot.slane %v240, 4
    %v242 = vadd.f32 %v240, %v241
    %v243 = vrot.slane %v242, 2
    %v244 = vadd.f32 %v242, %v243
    %v245 = vrot.slane %v244, 1
    %v246 = vadd.f32 %v244, %v245
    %v247 = vmul.f32 %v246, 0.00390625
    %v248 = vmul.f32 %v230, %v230
    %v249 = vmul.f32 %v231, %v231
    %250 = vadd.xlane.f32.xlu0 %v248
    %v251 = vpop.xlane.xlu0 %250
    %252 = vadd.xlane.f32.xlu0 %v249
    %v253 = vpop.xlane.xlu0 %252
    %v254 = vadd.f32 %v251, %v253
    %v255 = vrot.slane %v254, 4
    %v256 = vadd.f32 %v254, %v255
    %v257 = vrot.slane %v256, 2
    %v258 = vadd.f32 %v256, %v257
    %v259 = vrot.slane %v258, 1
    %v260 = vadd.f32 %v258, %v259
    %v261 = vmax.f32 %v260, 1e-30
    %v262 = vrsqrt.pop %v261
    %v263 = vmul.f32 %v247, %v262
    %v264 = vand.u32 2147483647, %v232
    %v265 = vand.u32 2147483647, %v233
    %266 = vadd.xlane.f32.xlu0 %v264
    %v267 = vpop.xlane.xlu0 %266
    %268 = vadd.xlane.f32.xlu0 %v265
    %v269 = vpop.xlane.xlu0 %268
    %v270 = vadd.f32 %v267, %v269
    %v271 = vrot.slane %v270, 4
    %v272 = vadd.f32 %v270, %v271
    %v273 = vrot.slane %v272, 2
    %v274 = vadd.f32 %v272, %v273
    %v275 = vrot.slane %v274, 1
    %v276 = vadd.f32 %v274, %v275
    %v277 = vmul.f32 %v276, 0.00390625
    %v278 = vmul.f32 %v232, %v232
    %v279 = vmul.f32 %v233, %v233
    %280 = vadd.xlane.f32.xlu0 %v278
    %v281 = vpop.xlane.xlu0 %280
    %282 = vadd.xlane.f32.xlu0 %v279
    %v283 = vpop.xlane.xlu0 %282
    %v284 = vadd.f32 %v281, %v283
    %v285 = vrot.slane %v284, 4
    %v286 = vadd.f32 %v284, %v285
    %v287 = vrot.slane %v286, 2
    %v288 = vadd.f32 %v286, %v287
    %v289 = vrot.slane %v288, 1
    %v290 = vadd.f32 %v288, %v289
    %v291 = vmax.f32 %v290, 1e-30
    %v292 = vrsqrt.pop %v291
    %v293 = vmul.f32 %v277, %v292
    %v294 = vadd.f32 %v229, %v263
    %v295 = vadd.f32 %v294, %v293
    %vm296 = vcmask 0
    %297 = vst.msk [vmem:[#allocation3] sm:$0x1] %vm296, %v295
    // Predicated region
    $region22: #{ase_forward.3} parent=1 // pred_check
      _
    $region23: #{ase_forward.3} parent=1 // pred_check_branch
      %299 = sbr.rel (0) target = $region25
    $region24: #{ase_forward.3} parent=1 // pred_region
      %s301 = ssub.s32 16, 16
      %302 = vsyncadd [#allocation4], %s301
      %s304 = sshll.u32 [#allocation3], 4
      %s305 = int_to_ptr.vmem [resolvable:$true] %s304
      %307 = dma.vmem_to_hbm [thread:$0]  %s305, 16, %s5, [#allocation4]
    $region25: #{ase_forward.3} parent=1 // pred_fallthru
      _
    // Predicated region
    $region26: #{ase_forward.3} parent=1 // pred_check
      _
    $region27: #{ase_forward.3} parent=1 // pred_check_branch
      %309 = sbr.rel (0) target = $region29
    $region28: #{ase_forward.3} parent=1 // pred_region
      %310 = dma.done [#allocation4], 16
    $region29: #{ase_forward.3} parent=1 // pred_fallthru
      _
    %311 = vsyncpa [#allocation4], 1

</llo_original>
